<compile_context>
chip_gen: v7x
topology: tpu7x:2x2x1
jax: 0.10.0
libtpu: 0.0.40
codegen_flags: <defaults>
</compile_context>

<pallas_src>
import functools

import jax
import jax.numpy as jnp
from jax.experimental import pallas as pl
from jax.experimental.pallas import tpu as pltpu
import numpy as np


def _gat_kernel(h_ref, w_ref, amat_ref, adj_ref, bias_ref, out_ref, *,
                n_head, f_out, mm_dtype):
    n = h_ref.shape[1]           # total number of nodes (keys)
    tq = adj_ref.shape[1]        # query rows handled by this program

    w_all = w_ref[...].astype(mm_dtype)        # (f_in, n_head*f_out)
    a_mat = amat_ref[...].astype(mm_dtype)     # (n_head*f_out, 2*n_head)
    adj = adj_ref[0]                           # (tq, n) int8, self-loops already baked in
    bias = bias_ref[...]                       # (1, n_head*f_out)

    # --- fused-head projection: one MXU matmul per batch, N = n_head*f_out lanes ---
    hp = jnp.dot(h_ref[0].astype(mm_dtype), w_all,
                 preferred_element_type=jnp.float32)           # (n, n_head*f_out) f32
    t = jnp.tanh(hp)                                           # EUP

    # --- attention logits on the MXU: t @ [a_src | a_dst] (block-diagonal per head) ---
    logits = jnp.dot(t.astype(mm_dtype), a_mat,
                     preferred_element_type=jnp.float32)       # (n, 2*n_head)

    if tq == n:                                                # single row tile (small n)
        src_all = logits[:, :n_head]                           # (tq, n_head)
    else:
        # query-row tile: recompute the cheap row-slice projection so all shapes
        # stay static; the key-side hp/logits above dominate.
        q0 = pl.multiple_of(pl.program_id(1) * tq, tq)
        h_q = h_ref[0, pl.ds(q0, tq), :].astype(mm_dtype)      # (tq, f_in)
        t_q = jnp.tanh(jnp.dot(h_q, w_all, preferred_element_type=jnp.float32))
        src_all = jnp.dot(t_q.astype(mm_dtype), a_mat[:, :n_head],
                          preferred_element_type=jnp.float32)  # (tq, n_head)

    keep = adj != 0                                            # (tq, n) bool
    # finite fill value: NaN-safe (the baked-in self-loop keeps every row max finite)
    neg_big = jnp.float32(-1e30)

    hp_mm = hp.astype(mm_dtype)
    cols = []
    for hd in range(n_head):
        src = src_all[:, hd:hd + 1]                            # (tq, 1)
        dst = logits[:, n_head + hd:n_head + hd + 1].T         # (1, n)  tiny XLU transpose
        a = src + dst                                          # (tq, n)
        a = jnp.maximum(a, 0.2 * a)                            # LeakyReLU(0.2), one VPU op
        a = jnp.where(keep, a, neg_big)
        m = jnp.max(a, axis=-1, keepdims=True)
        e = jnp.exp(a - m)
        s = jnp.sum(e, axis=-1, keepdims=True)
        # un-normalized attention @ V; normalize AFTER the matmul
        o = jnp.dot(e.astype(mm_dtype), hp_mm[:, hd * f_out:(hd + 1) * f_out],
                    preferred_element_type=jnp.float32)        # (tq, f_out)
        cols.append(o * pl.reciprocal(s, approx=True))         # EUP reciprocal

    # one lane-dense store (last dim = n_head*f_out) instead of masked partial stores
    out = jnp.concatenate(cols, axis=-1) + bias                # (tq, n_head*f_out)
    out_ref[...] = out[None]

    # TODO(synk): attention dropout (attn_dropout) omitted -> eval-mode behavior.


def batch_multi_head_graph_attention(h, adj, w, a_src, a_dst, bias=None, *,
                                     row_tile=256, compute_dtype=jnp.float32):
    """Forward of BatchMultiHeadGraphAttention.

    h:(bs,n,f_in)  adj:(bs,n,n) bool/{0,1}  w:(n_head,f_in,f_out)
    a_src/a_dst:(n_head,f_out,1)  bias:(f_out,) or None
    returns (bs, n_head, n, f_out) float32
    """
    bs, n, f_in = h.shape
    n_head, _, f_out = w.shape
    F = n_head * f_out

    # ---- one-time (XLA) preprocessing: done once, not per (batch, head) program ----
    # self-loop baked into the adjacency; shipped as int8 (4x fewer DMA bytes than f32)
    eye = jnp.eye(n, dtype=bool)
    adj_keep = (adj.astype(bool) | eye[None, :, :]).astype(jnp.int8)     # (bs, n, n)

    # heads fused along lanes: (f_in, n_head*f_out)
    w_all = jnp.transpose(w, (1, 0, 2)).reshape(f_in, F).astype(jnp.float32)

    # a_src / a_dst packed block-diagonally into a single MXU operand:
    # column hd -> src logits of head hd, column n_head+hd -> dst logits of head hd
    a_src2 = a_src.reshape(n_head, f_out).astype(jnp.float32)
    a_dst2 = a_dst.reshape(n_head, f_out).astype(jnp.float32)
    head_eye = jnp.eye(n_head, dtype=jnp.float32)
    amat_src = (a_src2[:, :, None] * head_eye[:, None, :]).reshape(F, n_head)
    amat_dst = (a_dst2[:, :, None] * head_eye[:, None, :]).reshape(F, n_head)
    amat = jnp.concatenate([amat_src, amat_dst], axis=1)                 # (F, 2*n_head)

    if bias is None:
        bias_all = jnp.zeros((1, F), jnp.float32)
    else:
        bias_all = jnp.tile(bias.reshape(1, f_out).astype(jnp.float32), (1, n_head))

    # ---- query-row tiling: bounds per-program VMEM (needed for big n on v7x) ----
    if n > row_tile and n % row_tile == 0:
        tq = row_tile
    else:
        tq = n
    n_rt = n // tq

    kernel = functools.partial(_gat_kernel, n_head=n_head, f_out=f_out,
                               mm_dtype=compute_dtype)

    out = pl.pallas_call(
        kernel,
        out_shape=jax.ShapeDtypeStruct((bs, n, F), jnp.float32),
        grid_spec=pltpu.PrefetchScalarGridSpec(
            num_scalar_prefetch=0,
            grid=(bs, n_rt),
            in_specs=[
                pl.BlockSpec((1, n, f_in), lambda b, r: (b, 0, 0)),      # h (all nodes)
                pl.BlockSpec((f_in, F), lambda b, r: (0, 0)),            # fused W
                pl.BlockSpec((F, 2 * n_head), lambda b, r: (0, 0)),      # packed a_src|a_dst
                pl.BlockSpec((1, tq, n), lambda b, r: (b, r, 0)),        # adj row tile, int8
                pl.BlockSpec((1, F), lambda b, r: (0, 0)),               # bias, lane-dense
            ],
            out_specs=pl.BlockSpec((1, tq, F), lambda b, r: (b, r, 0)),  # lane-dense output
        ),
        compiler_params=pltpu.CompilerParams(
            # both axes independent -> both TensorCores get work on v7x
            dimension_semantics=("parallel", "parallel"),
            # explicit scoped-VMEM budget; row_tile keeps the per-program live set under it
            vmem_limit_bytes=64 * 1024 * 1024,
        ),
    )(h.astype(jnp.float32), w_all, amat, adj_keep, bias_all)

    # (bs, n, n_head*f_out) lane-dense  ->  (bs, n_head, n, f_out) module layout
    return out.reshape(bs, n, n_head, f_out).transpose(0, 2, 1, 3)


def _reference(h, adj, w, a_src, a_dst, bias):
    # pure-JAX reference mirroring the PyTorch forward
    bs, n, f_in = h.shape
    n_head, _, f_out = w.shape
    h_prime = jnp.einsum('bnf,hfo->bhno', h, w)
    t = jnp.tanh(h_prime)
    attn_src = jnp.einsum('bhno,ho->bhn', t, a_src.reshape(n_head, f_out))[..., None]
    attn_dst = jnp.einsum('bhno,ho->bhn', t, a_dst.reshape(n_head, f_out))[..., None]
    attn = attn_src + jnp.swapaxes(attn_dst, -1, -2)                    # (bs,nh,n,n)
    attn = jnp.where(attn > 0, attn, 0.2 * attn)
    eye = jnp.eye(n, dtype=bool)
    keep = adj.astype(bool)[:, None, :, :] | eye[None, None]
    attn = jnp.where(keep, attn, -jnp.inf)
    attn = jax.nn.softmax(attn, axis=-1)
    out = jnp.einsum('bhnm,bhmo->bhno', attn, h_prime)
    if bias is not None:
        out = out + bias
    return out


if __name__ == "__main__":
    bs, n, f_in, f_out, n_head = 2, 8, 16, 32, 4

    key = jax.random.PRNGKey(0)
    k_h, k_adj, k_w, k_src, k_dst = jax.random.split(key, 5)

    h = jax.random.normal(k_h, (bs, n, f_in), dtype=jnp.float32)
    adj = jax.random.bernoulli(k_adj, 0.4, (bs, n, n))          # bool adjacency

    # deterministic xavier-uniform-style init (matches PyTorch fan computation)
    def xavier(key, shape, fan_in, fan_out):
        bound = np.sqrt(6.0 / (fan_in + fan_out))
        return jax.random.uniform(key, shape, jnp.float32, -bound, bound)

    # parameter shapes exactly as in the PyTorch module
    w = xavier(k_w, (n_head, f_in, f_out), f_in * f_out, n_head * f_out)
    a_src = xavier(k_src, (n_head, f_out, 1), f_out * 1, n_head * 1)
    a_dst = xavier(k_dst, (n_head, f_out, 1), f_out * 1, n_head * 1)
    bias = jnp.zeros((f_out,), dtype=jnp.float32)

    out = batch_multi_head_graph_attention(h, adj, w, a_src, a_dst, bias)
    out = jax.block_until_ready(out)

    ref = _reference(h, adj, w, a_src, a_dst, bias)
    assert out.shape == (bs, n_head, n, f_out)
    # tolerance leaves headroom for the EUP approximate reciprocal in the softmax scale
    np.testing.assert_allclose(np.asarray(out), np.asarray(ref), atol=2e-3, rtol=2e-3)

    print("KERNEL_OK")
</pallas_src>

<mosaic_0001>
module attributes {stable_mosaic.version = 11 : i64} {
  func.func @_gat_kernel(%arg0: i32, %arg1: i32, %arg2: memref<1x8x16xf32, #tpu.memory_space<vmem>>, %arg3: memref<16x128xf32, #tpu.memory_space<vmem>>, %arg4: memref<128x8xf32, #tpu.memory_space<vmem>>, %arg5: memref<1x8x8xi8, #tpu.memory_space<vmem>>, %arg6: memref<1x128xf32, #tpu.memory_space<vmem>>, %arg7: memref<1x8x128xf32, #tpu.memory_space<vmem>>) attributes {dimension_semantics = [#tpu.dimension_semantics<parallel>, #tpu.dimension_semantics<parallel>], iteration_bounds = array<i64: 2, 1>, scalar_prefetch = 0 : i64, scratch_operands = 0 : i64, tpu.core_type = #tpu.core_type<tc>, window_params = [{transform_indices = @transform_0, window_bounds = array<i64: 1, 8, 16>}, {pipeline_mode = #tpu.pipeline_mode<synchronous>, transform_indices = @transform_1, window_bounds = array<i64: 16, 128>}, {pipeline_mode = #tpu.pipeline_mode<synchronous>, transform_indices = @transform_2, window_bounds = array<i64: 128, 8>}, {transform_indices = @transform_3, window_bounds = array<i64: 1, 8, 8>}, {pipeline_mode = #tpu.pipeline_mode<synchronous>, transform_indices = @transform_4, window_bounds = array<i64: 1, 128>}, {transform_indices = @transform_5, window_bounds = array<i64: 1, 8, 128>}]} {
    %c0 = arith.constant 0 : index
    %c0_0 = arith.constant 0 : index
    %0 = vector.load %arg3[%c0, %c0_0] : memref<16x128xf32, #tpu.memory_space<vmem>>, vector<16x128xf32>
    %c0_1 = arith.constant 0 : index
    %c0_2 = arith.constant 0 : index
    %1 = vector.load %arg4[%c0_1, %c0_2] : memref<128x8xf32, #tpu.memory_space<vmem>>, vector<128x8xf32>
    %c0_3 = arith.constant 0 : index
    %c0_4 = arith.constant 0 : index
    %c0_5 = arith.constant 0 : index
    %2 = vector.load %arg5[%c0_3, %c0_4, %c0_5] : memref<1x8x8xi8, #tpu.memory_space<vmem>>, vector<1x8x8xi8>
    %3 = vector.shape_cast %2 : vector<1x8x8xi8> to vector<8x8xi8>
    %c0_6 = arith.constant 0 : index
    %c0_7 = arith.constant 0 : index
    %4 = vector.load %arg6[%c0_6, %c0_7] : memref<1x128xf32, #tpu.memory_space<vmem>>, vector<1x128xf32>
    %c0_8 = arith.constant 0 : index
    %c0_9 = arith.constant 0 : index
    %c0_10 = arith.constant 0 : index
    %5 = vector.load %arg2[%c0_8, %c0_9, %c0_10] : memref<1x8x16xf32, #tpu.memory_space<vmem>>, vector<1x8x16xf32>
    %6 = vector.shape_cast %5 : vector<1x8x16xf32> to vector<8x16xf32>
    %cst = arith.constant dense<0.000000e+00> : vector<8x128xf32>
    %7 = tpu.matmul %6, %0, %cst {dimension_numbers = #tpu.dot_dimension_numbers<[1], [0], [0], [1], [0, 0, 1, 1], [], []>} : vector<8x16xf32>, vector<16x128xf32>, vector<8x128xf32> -> vector<8x128xf32>
    %8 = math.tanh %7 : vector<8x128xf32>
    %cst_11 = arith.constant dense<0.000000e+00> : vector<8x8xf32>
    %9 = tpu.matmul %8, %1, %cst_11 {dimension_numbers = #tpu.dot_dimension_numbers<[1], [0], [0], [1], [0, 0, 1, 1], [], []>} : vector<8x128xf32>, vector<128x8xf32>, vector<8x8xf32> -> vector<8x8xf32>
    %10 = vector.extract_strided_slice %9 {offsets = [0, 0], sizes = [8, 4], strides = [1, 1]} : vector<8x8xf32> to vector<8x4xf32>
    %c0_i8 = arith.constant 0 : i8
    %11 = vector.broadcast %c0_i8 : i8 to vector<8x8xi8>
    %12 = arith.cmpi ne, %3, %11 : vector<8x8xi8>
    %13 = vector.extract_strided_slice %10 {offsets = [0, 0], sizes = [8, 1], strides = [1, 1]} : vector<8x4xf32> to vector<8x1xf32>
    %14 = vector.extract_strided_slice %9 {offsets = [0, 4], sizes = [8, 1], strides = [1, 1]} : vector<8x8xf32> to vector<8x1xf32>
    %15 = tpu.transpose %14, [1, 0] : vector<8x1xf32> -> vector<1x8xf32>
    %16 = vector.broadcast %13 : vector<8x1xf32> to vector<8x8xf32>
    %17 = vector.broadcast %15 : vector<1x8xf32> to vector<8x8xf32>
    %18 = arith.addf %16, %17 : vector<8x8xf32>
    %cst_12 = arith.constant 2.000000e-01 : f32
    %19 = vector.broadcast %cst_12 : f32 to vector<8x8xf32>
    %20 = arith.mulf %19, %18 : vector<8x8xf32>
    %21 = arith.maximumf %18, %20 : vector<8x8xf32>
    %cst_13 = arith.constant -1.000000e+30 : f32
    %22 = vector.broadcast %cst_13 : f32 to vector<8x8xf32>
    %23 = arith.select %12, %21, %22 : vector<8x8xi1>, vector<8x8xf32>
    %cst_14 = arith.constant dense<0xFF800000> : vector<8xf32>
    %24 = vector.multi_reduction <maximumf>, %23, %cst_14 [1] : vector<8x8xf32> to vector<8xf32>
    %25 = vector.shape_cast %24 : vector<8xf32> to vector<8x1xf32>
    %26 = vector.broadcast %25 : vector<8x1xf32> to vector<8x8xf32>
    %27 = arith.subf %23, %26 : vector<8x8xf32>
    %28 = math.exp %27 : vector<8x8xf32>
    %cst_15 = arith.constant dense<0.000000e+00> : vector<8xf32>
    %29 = vector.multi_reduction <add>, %28, %cst_15 [1] : vector<8x8xf32> to vector<8xf32>
    %30 = vector.shape_cast %29 : vector<8xf32> to vector<8x1xf32>
    %31 = vector.extract_strided_slice %7 {offsets = [0, 0], sizes = [8, 32], strides = [1, 1]} : vector<8x128xf32> to vector<8x32xf32>
    %cst_16 = arith.constant dense<0.000000e+00> : vector<8x32xf32>
    %32 = tpu.matmul %28, %31, %cst_16 {dimension_numbers = #tpu.dot_dimension_numbers<[1], [0], [0], [1], [0, 0, 1, 1], [], []>} : vector<8x8xf32>, vector<8x32xf32>, vector<8x32xf32> -> vector<8x32xf32>
    %33 = tpu.reciprocal %30 {approx = true} : vector<8x1xf32> -> vector<8x1xf32>
    %34 = vector.broadcast %33 : vector<8x1xf32> to vector<8x32xf32>
    %35 = arith.mulf %32, %34 : vector<8x32xf32>
    %36 = vector.extract_strided_slice %10 {offsets = [0, 1], sizes = [8, 1], strides = [1, 1]} : vector<8x4xf32> to vector<8x1xf32>
    %37 = vector.extract_strided_slice %9 {offsets = [0, 5], sizes = [8, 1], strides = [1, 1]} : vector<8x8xf32> to vector<8x1xf32>
    %38 = tpu.transpose %37, [1, 0] : vector<8x1xf32> -> vector<1x8xf32>
    %39 = vector.broadcast %36 : vector<8x1xf32> to vector<8x8xf32>
    %40 = vector.broadcast %38 : vector<1x8xf32> to vector<8x8xf32>
    %41 = arith.addf %39, %40 : vector<8x8xf32>
    %cst_17 = arith.constant 2.000000e-01 : f32
    %42 = vector.broadcast %cst_17 : f32 to vector<8x8xf32>
    %43 = arith.mulf %42, %41 : vector<8x8xf32>
    %44 = arith.maximumf %41, %43 : vector<8x8xf32>
    %cst_18 = arith.constant -1.000000e+30 : f32
    %45 = vector.broadcast %cst_18 : f32 to vector<8x8xf32>
    %46 = arith.select %12, %44, %45 : vector<8x8xi1>, vector<8x8xf32>
    %cst_19 = arith.constant dense<0xFF800000> : vector<8xf32>
    %47 = vector.multi_reduction <maximumf>, %46, %cst_19 [1] : vector<8x8xf32> to vector<8xf32>
    %48 = vector.shape_cast %47 : vector<8xf32> to vector<8x1xf32>
    %49 = vector.broadcast %48 : vector<8x1xf32> to vector<8x8xf32>
    %50 = arith.subf %46, %49 : vector<8x8xf32>
    %51 = math.exp %50 : vector<8x8xf32>
    %cst_20 = arith.constant dense<0.000000e+00> : vector<8xf32>
    %52 = vector.multi_reduction <add>, %51, %cst_20 [1] : vector<8x8xf32> to vector<8xf32>
    %53 = vector.shape_cast %52 : vector<8xf32> to vector<8x1xf32>
    %54 = vector.extract_strided_slice %7 {offsets = [0, 32], sizes = [8, 32], strides = [1, 1]} : vector<8x128xf32> to vector<8x32xf32>
    %cst_21 = arith.constant dense<0.000000e+00> : vector<8x32xf32>
    %55 = tpu.matmul %51, %54, %cst_21 {dimension_numbers = #tpu.dot_dimension_numbers<[1], [0], [0], [1], [0, 0, 1, 1], [], []>} : vector<8x8xf32>, vector<8x32xf32>, vector<8x32xf32> -> vector<8x32xf32>
    %56 = tpu.reciprocal %53 {approx = true} : vector<8x1xf32> -> vector<8x1xf32>
    %57 = vector.broadcast %56 : vector<8x1xf32> to vector<8x32xf32>
    %58 = arith.mulf %55, %57 : vector<8x32xf32>
    %59 = vector.extract_strided_slice %10 {offsets = [0, 2], sizes = [8, 1], strides = [1, 1]} : vector<8x4xf32> to vector<8x1xf32>
    %60 = vector.extract_strided_slice %9 {offsets = [0, 6], sizes = [8, 1], strides = [1, 1]} : vector<8x8xf32> to vector<8x1xf32>
    %61 = tpu.transpose %60, [1, 0] : vector<8x1xf32> -> vector<1x8xf32>
    %62 = vector.broadcast %59 : vector<8x1xf32> to vector<8x8xf32>
    %63 = vector.broadcast %61 : vector<1x8xf32> to vector<8x8xf32>
    %64 = arith.addf %62, %63 : vector<8x8xf32>
    %cst_22 = arith.constant 2.000000e-01 : f32
    %65 = vector.broadcast %cst_22 : f32 to vector<8x8xf32>
    %66 = arith.mulf %65, %64 : vector<8x8xf32>
    %67 = arith.maximumf %64, %66 : vector<8x8xf32>
    %cst_23 = arith.constant -1.000000e+30 : f32
    %68 = vector.broadcast %cst_23 : f32 to vector<8x8xf32>
    %69 = arith.select %12, %67, %68 : vector<8x8xi1>, vector<8x8xf32>
    %cst_24 = arith.constant dense<0xFF800000> : vector<8xf32>
    %70 = vector.multi_reduction <maximumf>, %69, %cst_24 [1] : vector<8x8xf32> to vector<8xf32>
    %71 = vector.shape_cast %70 : vector<8xf32> to vector<8x1xf32>
    %72 = vector.broadcast %71 : vector<8x1xf32> to vector<8x8xf32>
    %73 = arith.subf %69, %72 : vector<8x8xf32>
    %74 = math.exp %73 : vector<8x8xf32>
    %cst_25 = arith.constant dense<0.000000e+00> : vector<8xf32>
    %75 = vector.multi_reduction <add>, %74, %cst_25 [1] : vector<8x8xf32> to vector<8xf32>
    %76 = vector.shape_cast %75 : vector<8xf32> to vector<8x1xf32>
    %77 = vector.extract_strided_slice %7 {offsets = [0, 64], sizes = [8, 32], strides = [1, 1]} : vector<8x128xf32> to vector<8x32xf32>
    %cst_26 = arith.constant dense<0.000000e+00> : vector<8x32xf32>
    %78 = tpu.matmul %74, %77, %cst_26 {dimension_numbers = #tpu.dot_dimension_numbers<[1], [0], [0], [1], [0, 0, 1, 1], [], []>} : vector<8x8xf32>, vector<8x32xf32>, vector<8x32xf32> -> vector<8x32xf32>
    %79 = tpu.reciprocal %76 {approx = true} : vector<8x1xf32> -> vector<8x1xf32>
    %80 = vector.broadcast %79 : vector<8x1xf32> to vector<8x32xf32>
    %81 = arith.mulf %78, %80 : vector<8x32xf32>
    %82 = vector.extract_strided_slice %10 {offsets = [0, 3], sizes = [8, 1], strides = [1, 1]} : vector<8x4xf32> to vector<8x1xf32>
    %83 = vector.extract_strided_slice %9 {offsets = [0, 7], sizes = [8, 1], strides = [1, 1]} : vector<8x8xf32> to vector<8x1xf32>
    %84 = tpu.transpose %83, [1, 0] : vector<8x1xf32> -> vector<1x8xf32>
    %85 = vector.broadcast %82 : vector<8x1xf32> to vector<8x8xf32>
    %86 = vector.broadcast %84 : vector<1x8xf32> to vector<8x8xf32>
    %87 = arith.addf %85, %86 : vector<8x8xf32>
    %cst_27 = arith.constant 2.000000e-01 : f32
    %88 = vector.broadcast %cst_27 : f32 to vector<8x8xf32>
    %89 = arith.mulf %88, %87 : vector<8x8xf32>
    %90 = arith.maximumf %87, %89 : vector<8x8xf32>
    %cst_28 = arith.constant -1.000000e+30 : f32
    %91 = vector.broadcast %cst_28 : f32 to vector<8x8xf32>
    %92 = arith.select %12, %90, %91 : vector<8x8xi1>, vector<8x8xf32>
    %cst_29 = arith.constant dense<0xFF800000> : vector<8xf32>
    %93 = vector.multi_reduction <maximumf>, %92, %cst_29 [1] : vector<8x8xf32> to vector<8xf32>
    %94 = vector.shape_cast %93 : vector<8xf32> to vector<8x1xf32>
    %95 = vector.broadcast %94 : vector<8x1xf32> to vector<8x8xf32>
    %96 = arith.subf %92, %95 : vector<8x8xf32>
    %97 = math.exp %96 : vector<8x8xf32>
    %cst_30 = arith.constant dense<0.000000e+00> : vector<8xf32>
    %98 = vector.multi_reduction <add>, %97, %cst_30 [1] : vector<8x8xf32> to vector<8xf32>
    %99 = vector.shape_cast %98 : vector<8xf32> to vector<8x1xf32>
    %100 = vector.extract_strided_slice %7 {offsets = [0, 96], sizes = [8, 32], strides = [1, 1]} : vector<8x128xf32> to vector<8x32xf32>
    %cst_31 = arith.constant dense<0.000000e+00> : vector<8x32xf32>
    %101 = tpu.matmul %97, %100, %cst_31 {dimension_numbers = #tpu.dot_dimension_numbers<[1], [0], [0], [1], [0, 0, 1, 1], [], []>} : vector<8x8xf32>, vector<8x32xf32>, vector<8x32xf32> -> vector<8x32xf32>
    %102 = tpu.reciprocal %99 {approx = true} : vector<8x1xf32> -> vector<8x1xf32>
    %103 = vector.broadcast %102 : vector<8x1xf32> to vector<8x32xf32>
    %104 = arith.mulf %101, %103 : vector<8x32xf32>
    %105 = tpu.concatenate %35, %58, %81, %104 in 1 : vector<8x32xf32>, vector<8x32xf32>, vector<8x32xf32>, vector<8x32xf32> -> vector<8x128xf32>
    %106 = vector.broadcast %4 : vector<1x128xf32> to vector<8x128xf32>
    %107 = arith.addf %105, %106 : vector<8x128xf32>
    %108 = vector.shape_cast %107 : vector<8x128xf32> to vector<1x8x128xf32>
    %c0_32 = arith.constant 0 : index
    %c0_33 = arith.constant 0 : index
    %c0_34 = arith.constant 0 : index
    %109 = vector.load %arg7[%c0_32, %c0_33, %c0_34] : memref<1x8x128xf32, #tpu.memory_space<vmem>>, vector<1x8x128xf32>
    tpu.vector_store %arg7[%c0_32, %c0_33, %c0_34], %108 {strides = array<i32>} : memref<1x8x128xf32, #tpu.memory_space<vmem>>, vector<1x8x128xf32>,
    return
  }
  func.func @transform_0(%arg0: i32, %arg1: i32) -> (i32, i32, i32) {
    %c0_i32 = arith.constant 0 : i32
    %c0_i32_0 = arith.constant 0 : i32
    %c0_i32_1 = arith.constant 0 : i32
    return %arg0, %c0_i32, %c0_i32_0 : i32, i32, i32
  }
  func.func @transform_1(%arg0: i32, %arg1: i32) -> (i32, i32) {
    %c0_i32 = arith.constant 0 : i32
    %c0_i32_0 = arith.constant 0 : i32
    %c0_i32_1 = arith.constant 0 : i32
    return %c0_i32, %c0_i32_0 : i32, i32
  }
  func.func @transform_2(%arg0: i32, %arg1: i32) -> (i32, i32) {
    %c0_i32 = arith.constant 0 : i32
    %c0_i32_0 = arith.constant 0 : i32
    %c0_i32_1 = arith.constant 0 : i32
    return %c0_i32, %c0_i32_0 : i32, i32
  }
  func.func @transform_3(%arg0: i32, %arg1: i32) -> (i32, i32, i32) {
    %c0_i32 = arith.constant 0 : i32
    %c0_i32_0 = arith.constant 0 : i32
    return %arg0, %arg1, %c0_i32 : i32, i32, i32
  }
  func.func @transform_4(%arg0: i32, %arg1: i32) -> (i32, i32) {
    %c0_i32 = arith.constant 0 : i32
    %c0_i32_0 = arith.constant 0 : i32
    %c0_i32_1 = arith.constant 0 : i32
    return %c0_i32, %c0_i32_0 : i32, i32
  }
  func.func @transform_5(%arg0: i32, %arg1: i32) -> (i32, i32, i32) {
    %c0_i32 = arith.constant 0 : i32
    %c0_i32_0 = arith.constant 0 : i32
    return %arg0, %arg1, %c0_i32 : i32, i32, i32
  }
}

</mosaic_0001>

<llo_original>
// kernel: tpu_custom_call.1
$region0: #{tpu_custom_call.1}
  #allocation0 [shape = 'u32[]', space=smem, size = 0x4, offset = 0x4, fixed_abs, tag = 'smem constant byte address 0x4 - core index']
  #allocation1 [shape = 'u32[144,128]{1,0:T(1,128)}', space=vmem, size = 0x12000, scoped, tag = 'internal scratch']
  %s0 = inlined_call_operand.hbm [shape: f32[2,8,16], index: 0, kind: input, shape index: {}]
  %s1 = inlined_call_operand.hbm [shape: f32[16,128], index: 1, kind: input, shape index: {}]
  %s2 = inlined_call_operand.hbm [shape: f32[128,8], index: 2, kind: input, shape index: {}]
  %s3 = inlined_call_operand.hbm [shape: s8[2,8,8], index: 3, kind: input, shape index: {}]
  %s4 = inlined_call_operand.hbm [shape: f32[1,128], index: 4, kind: input, shape index: {}]
  %s5 = inlined_call_operand.hbm [shape: f32[2,8,128], index: 5, kind: output, shape index: {}]
  %s6 = sld [smem:[#allocation0]]
  $region73: #{tpu_custom_call.1} parent=0
    _
  %s8 = ssub.s32 1, %s6
  %s9 = scalar_select 0, %s8, %s6
  $region1: #{tpu_custom_call.1} parent=0
    #allocation2 [shape = 'u8[8192]{0}', space=vmem, size = 0x2000, scoped, tag = 'input window, operand 0']
    #allocation3 [shape = 's32[2]{0}', space=sflag, size = 0x8, scoped, tag = 'scoped memory for tpu_custom_call.1']
    #allocation4 [shape = 's32[2]{0}', space=sflag, size = 0x8, scoped, tag = 'scoped memory for tpu_custom_call.1']
    #allocation5 [shape = 'u8[8192]{0}', space=vmem, size = 0x2000, scoped, tag = 'input window, operand 1, single buffered']
    #allocation6 [shape = 's32[1]{0}', space=sflag, size = 0x4, scoped, tag = 'scoped memory for tpu_custom_call.1']
    #allocation7 [shape = 'u8[65536]{0}', space=vmem, size = 0x10000, scoped, tag = 'input window, operand 2, single buffered']
    #allocation8 [shape = 'u8[2048]{0}', space=vmem, size = 0x800, scoped, tag = 'input window, operand 3']
    #allocation9 [shape = 's32[2]{0}', space=sflag, size = 0x8, scoped, tag = 'scoped memory for tpu_custom_call.1']
    #allocation10 [shape = 'u8[512]{0}', space=vmem, size = 0x400, scoped, tag = 'input window, operand 4, single buffered']
    #allocation11 [shape = 'u8[8192]{0}', space=vmem, size = 0x2000, scoped, tag = 'output window, operand 0']
    %10 = vsyncpa [#allocation3], 0
    %s11 = scalar_lea.sflag [#allocation3], 1
    %12 = vsyncpa %s11, 0
    %13 = vsyncpa [#allocation6], 0
    %14 = vsyncpa [#allocation9], 0
    %s15 = scalar_lea.sflag [#allocation9], 1
    %16 = vsyncpa %s15, 0
    %17 = vsyncpa [#allocation4], 0
    %s18 = scalar_lea.sflag [#allocation4], 1
    %19 = vsyncpa %s18, 0
    loop: start=0, step=1, limit=4
    $region2: #{tpu_custom_call.1} parent=1 // loop_pre_header
      _
    $region3: #{tpu_custom_call.1} parent=1 // loop_header
      %s21 = sphi 0, %s25
      %p22 = scmp.ge.s32.totalorder %s21, 4
      %s28 = sphi 0, %s40
      %s29 = sphi 0, %s36
      %s30 = sphi 0, %s28
      %s31 = sphi 0, %s29
      %s32 = sphi 0, %s30
      %s33 = sphi 0, %s31
      %s43 = sphi 0, %s45
      %s46 = sphi 0, %s43
      %s47 = sphi 0, %s46
      %s63 = sphi 0, %s47
      %s67 = sphi 0, %s67
      %s69 = sphi 0, %s67
      %s70 = sphi 0, %s69
      %s84 = sphi 0, %s70
      %s88 = sphi 0, %s88
      %s90 = sphi 0, %s88
      %s91 = sphi 0, %s90
      %s105 = sphi 0, %s91
      %s113 = sphi 0, %s115
      %s116 = sphi 0, %s113
      %s117 = sphi 0, %s116
      %s133 = sphi 0, %s117
      %s137 = sphi 0, %s137
      %s139 = sphi 0, %s137
      %s140 = sphi 0, %s139
      %s154 = sphi 0, %s140
      %s162 = sphi 0, %s164
      %s165 = sphi 0, %s162
      %s166 = sphi 0, %s165
      %s182 = sphi 0, %s166
    $region4: #{tpu_custom_call.1} parent=1 // loop_header_branch
      %24 = sbr.rel (%p22) target = $region8
    $region5: #{tpu_custom_call.1} parent=1 // loop_body
      %s26 = ssub.s32 %s21, 1
      %s27 = ssub.s32 %s21, 2
      %s34 = sadd.s32 1, %s29
      %p35 = scmp.ge.s32.totalorder %s34, 1
      %s36 = scalar_select %p35, 0, %s34
      %s37 = sadd.s32 1, %s28
      %s38 = scalar_select %p35, %s37, %s28
      %p39 = scmp.ge.s32.totalorder %s38, 2
      %s40 = scalar_select %p39, 0, %s38
      %s41 = ssub.s32 %s28, %s40
      %p42 = scmp.eq.s32.totalorder %s41, 0
      %s44 = sadd.s32 %s43, 1
      %s45 = scalar_select %p42, %s43, %s44
      %p48 = pneg %p42
      %p49 = scmp.eq.s32.totalorder %s21, 1
      %p50 = por %p48, %p49
      %p51 = scmp.ne.s32.totalorder %s43, %s46
      %p52 = scmp.eq.s32.totalorder %s21, 0
      %p53 = por %p51, %p52
      %p54 = scmp.ne.s32.totalorder %s43, %s46
      %p55 = scmp.eq.s32.totalorder %s26, 1
      %p56 = por %p54, %p55
      %p57 = scmp.ne.s32.totalorder %s46, %s47
      %p58 = scmp.eq.s32.totalorder %s26, 0
      %p59 = por %p57, %p58
      %p60 = scmp.ne.s32.totalorder %s46, %s47
      %p61 = scmp.eq.s32.totalorder %s27, 1
      %p62 = por %p60, %p61
      %p64 = scmp.ne.s32.totalorder %s47, %s63
      %p65 = scmp.eq.s32.totalorder %s27, 0
      %p66 = por %p64, %p65
      %s68 = sadd.s32 %s67, 1
      %p71 = scmp.eq.s32.totalorder %s21, 1
      %p72 = scmp.ne.s32.totalorder %s67, %s69
      %p73 = scmp.eq.s32.totalorder %s21, 0
      %p74 = por %p72, %p73
      %p75 = scmp.ne.s32.totalorder %s67, %s69
      %p76 = scmp.eq.s32.totalorder %s26, 1
      %p77 = por %p75, %p76
      %p78 = scmp.ne.s32.totalorder %s69, %s70
      %p79 = scmp.eq.s32.totalorder %s26, 0
      %p80 = por %p78, %p79
      %p81 = scmp.ne.s32.totalorder %s69, %s70
      %p82 = scmp.eq.s32.totalorder %s27, 1
      %p83 = por %p81, %p82
      %p85 = scmp.ne.s32.totalorder %s70, %s84
      %p86 = scmp.eq.s32.totalorder %s27, 0
      %p87 = por %p85, %p86
      %s89 = sadd.s32 %s88, 1
      %p92 = scmp.eq.s32.totalorder %s21, 1
      %p93 = scmp.ne.s32.totalorder %s88, %s90
      %p94 = scmp.eq.s32.totalorder %s21, 0
      %p95 = por %p93, %p94
      %p96 = scmp.ne.s32.totalorder %s88, %s90
      %p97 = scmp.eq.s32.totalorder %s26, 1
      %p98 = por %p96, %p97
      %p99 = scmp.ne.s32.totalorder %s90, %s91
      %p100 = scmp.eq.s32.totalorder %s26, 0
      %p101 = por %p99, %p100
      %p102 = scmp.ne.s32.totalorder %s90, %s91
      %p103 = scmp.eq.s32.totalorder %s27, 1
      %p104 = por %p102, %p103
      %p106 = scmp.ne.s32.totalorder %s91, %s105
      %p107 = scmp.eq.s32.totalorder %s27, 0
      %p108 = por %p106, %p107
      %s109 = ssub.s32 %s28, %s40
      %s110 = ssub.s32 %s29, %s36
      %s111 = sor.u32 %s109, %s110
      %p112 = scmp.eq.s32.totalorder %s111, 0
      %s114 = sadd.s32 %s113, 1
      %s115 = scalar_select %p112, %s113, %s114
      %p118 = pneg %p112
      %p119 = scmp.eq.s32.totalorder %s21, 1
      %p120 = por %p118, %p119
      %p121 = scmp.ne.s32.totalorder %s113, %s116
      %p122 = scmp.eq.s32.totalorder %s21, 0
      %p123 = por %p121, %p122
      %p124 = scmp.ne.s32.totalorder %s113, %s116
      %p125 = scmp.eq.s32.totalorder %s26, 1
      %p126 = por %p124, %p125
      %p127 = scmp.ne.s32.totalorder %s116, %s117
      %p128 = scmp.eq.s32.totalorder %s26, 0
      %p129 = por %p127, %p128
      %p130 = scmp.ne.s32.totalorder %s116, %s117
      %p131 = scmp.eq.s32.totalorder %s27, 1
      %p132 = por %p130, %p131
      %p134 = scmp.ne.s32.totalorder %s117, %s133
      %p135 = scmp.eq.s32.totalorder %s27, 0
      %p136 = por %p134, %p135
      %s138 = sadd.s32 %s137, 1
      %p141 = scmp.eq.s32.totalorder %s21, 1
      %p142 = scmp.ne.s32.totalorder %s137, %s139
      %p143 = scmp.eq.s32.totalorder %s21, 0
      %p144 = por %p142, %p143
      %p145 = scmp.ne.s32.totalorder %s137, %s139
      %p146 = scmp.eq.s32.totalorder %s26, 1
      %p147 = por %p145, %p146
      %p148 = scmp.ne.s32.totalorder %s139, %s140
      %p149 = scmp.eq.s32.totalorder %s26, 0
      %p150 = por %p148, %p149
      %p151 = scmp.ne.s32.totalorder %s139, %s140
      %p152 = scmp.eq.s32.totalorder %s27, 1
      %p153 = por %p151, %p152
      %p155 = scmp.ne.s32.totalorder %s140, %s154
      %p156 = scmp.eq.s32.totalorder %s27, 0
      %p157 = por %p155, %p156
      %s158 = ssub.s32 %s28, %s40
      %s159 = ssub.s32 %s29, %s36
      %s160 = sor.u32 %s158, %s159
      %p161 = scmp.eq.s32.totalorder %s160, 0
      %s163 = sadd.s32 %s162, 1
      %s164 = scalar_select %p161, %s162, %s163
      %p167 = pneg %p161
      %p168 = scmp.eq.s32.totalorder %s21, 1
      %p169 = por %p167, %p168
      %p170 = scmp.ne.s32.totalorder %s162, %s165
      %p171 = scmp.eq.s32.totalorder %s21, 0
      %p172 = por %p170, %p171
      %p173 = scmp.ne.s32.totalorder %s162, %s165
      %p174 = scmp.eq.s32.totalorder %s26, 1
      %p175 = por %p173, %p174
      %p176 = scmp.ne.s32.totalorder %s165, %s166
      %p177 = scmp.eq.s32.totalorder %s26, 0
      %p178 = por %p176, %p177
      %p179 = scmp.ne.s32.totalorder %s165, %s166
      %p180 = scmp.eq.s32.totalorder %s27, 1
      %p181 = por %p179, %p180
      %p183 = scmp.ne.s32.totalorder %s166, %s182
      %p184 = scmp.eq.s32.totalorder %s27, 0
      %p185 = por %p183, %p184
      %p186 = scmp.le.s32.totalorder 1, %s21
      %p187 = scmp.lt.s32.totalorder %s21, 3
      %p188 = pnand %p186, %p187
      %p189 = pneg %p188
      // Predicated region
      $region9: #{tpu_custom_call.1} parent=5 // pred_check
        _
      $region10: #{tpu_custom_call.1} parent=5 // pred_check_branch
        %191 = sbr.rel (%p188) target = $region12
      $region11: #{tpu_custom_call.1} parent=5 // pred_region
        %s192 = ssub.s32 %s21, 1
        // Predicated region
        $region13: #{tpu_custom_call.1} parent=11 // pred_check
          %p193 = pneg %p80
        $region14: #{tpu_custom_call.1} parent=11 // pred_check_branch
          %195 = sbr.rel (%p193) target = $region16
        $region15: #{tpu_custom_call.1} parent=11 // pred_region
          %s197 = ssub.s32 256, 256
          %198 = vsyncadd [#allocation6], %s197
          %s199 = sshll.u32 [#allocation5], 4
          %s200 = int_to_ptr.vmem [resolvable:$true] %s199
          %205 = dma.hbm_to_vmem [thread:$0]  %s1, 256, %s200, [#allocation6], 128, 128, 8
        $region16: #{tpu_custom_call.1} parent=11 // pred_fallthru
          _
        // Predicated region
        $region17: #{tpu_custom_call.1} parent=11 // pred_check
          %p206 = pneg %p101
        $region18: #{tpu_custom_call.1} parent=11 // pred_check_branch
          %208 = sbr.rel (%p206) target = $region20
        $region19: #{tpu_custom_call.1} parent=11 // pred_region
          %s210 = ssub.s32 2048, 2048
          %211 = vsyncadd [#allocation6], %s210
          %s212 = sshll.u32 [#allocation7], 4
          %s213 = int_to_ptr.vmem [resolvable:$true] %s212
          %218 = dma.hbm_to_vmem [thread:$0]  %s2, 2048, %s213, [#allocation6], 128, 128, 8
        $region20: #{tpu_custom_call.1} parent=11 // pred_fallthru
          _
        // Predicated region
        $region21: #{tpu_custom_call.1} parent=11 // pred_check
          %p219 = pneg %p150
        $region22: #{tpu_custom_call.1} parent=11 // pred_check_branch
          %221 = sbr.rel (%p219) target = $region24
        $region23: #{tpu_custom_call.1} parent=11 // pred_region
          %s223 = ssub.s32 16, 16
          %224 = vsyncadd [#allocation9], %s223
          %s226 = sshll.u32 [#allocation10], 4
          %s227 = int_to_ptr.vmem [resolvable:$true] %s226
          %229 = dma.hbm_to_vmem [thread:$0]  %s4, 16, %s227, [#allocation9]
        $region24: #{tpu_custom_call.1} parent=11 // pred_fallthru
          _
      $region12: #{tpu_custom_call.1} parent=5 // pred_fallthru
        _
      %p230 = scmp.lt.s32.totalorder %s21, 2
      // Predicated region
      $region25: #{tpu_custom_call.1} parent=5 // pred_check
        %p231 = pneg %p230
      $region26: #{tpu_custom_call.1} parent=5 // pred_check_branch
        %233 = sbr.rel (%p231) target = $region28
      $region27: #{tpu_custom_call.1} parent=5 // pred_region
        // Predicated region
        $region29: #{tpu_custom_call.1} parent=27 // pred_check
          %p234 = pneg %p53
        $region30: #{tpu_custom_call.1} parent=27 // pred_check_branch
          %236 = sbr.rel (%p234) target = $region32
        $region31: #{tpu_custom_call.1} parent=27 // pred_region
          %s237 = sand.u32 %s43, 1
          %s238 = scalar_lea.sflag [#allocation3], %s237
          %s239 = sand.u32 %s43, 1
          %s240 = smul.addr %s239, 8
          %s241 = scalar_lea.vmem [#allocation2], %s240
          %s243 = ssub.s32 128, 128
          %244 = vsyncadd %s238, %s243
          %s245 = smul.addr %s28, 128
          %s246 = scalar_lea.hbm %s0, %s245
          %s248 = sshll.u32 %s241, 4
          %s249 = int_to_ptr.vmem [resolvable:$true] %s248
          %251 = dma.hbm_to_vmem [thread:$0]  %s246, 128, %s249, %s238
        $region32: #{tpu_custom_call.1} parent=27 // pred_fallthru
          _
        // Predicated region
        $region33: #{tpu_custom_call.1} parent=27 // pred_check
          %p252 = pneg %p123
        $region34: #{tpu_custom_call.1} parent=27 // pred_check_branch
          %254 = sbr.rel (%p252) target = $region36
        $region35: #{tpu_custom_call.1} parent=27 // pred_region
          %s255 = sand.u32 %s21, 1
          %s256 = scalar_lea.sflag [#allocation9], %s255
          %s257 = sand.u32 %s113, 1
          %s258 = smul.addr %s257, 2
          %s259 = scalar_lea.vmem [#allocation8], %s258
          %s261 = ssub.s32 32, 32
          %262 = vsyncadd %s256, %s261
          %s263 = sadd.s32 %s29, %s28
          %s264 = smul.addr %s263, 32
          %s265 = scalar_lea.hbm %s3, %s264
          %s267 = sshll.u32 %s259, 4
          %s268 = int_to_ptr.vmem [resolvable:$true] %s267
          %270 = dma.hbm_to_vmem [thread:$0]  %s265, 32, %s268, %s256
        $region36: #{tpu_custom_call.1} parent=27 // pred_fallthru
          _
      $region28: #{tpu_custom_call.1} parent=5 // pred_fallthru
        _
      %p271 = scmp.le.s32.totalorder 1, %s21
      %p272 = scmp.lt.s32.totalorder %s21, 3
      %p273 = pnand %p271, %p272
      %p274 = pneg %p273
      // Predicated region
      $region37: #{tpu_custom_call.1} parent=5 // pred_check
        _
      $region38: #{tpu_custom_call.1} parent=5 // pred_check_branch
        %276 = sbr.rel (%p273) target = $region40
      $region39: #{tpu_custom_call.1} parent=5 // pred_region
        %s277 = ssub.s32 %s21, 1
        %s278 = sand.u32 %s46, 1
        %s279 = scalar_lea.sflag [#allocation3], %s278
        %s280 = sand.u32 %s46, 1
        %s281 = smul.addr %s280, 8
        %s282 = scalar_lea.vmem [#allocation2], %s281
        // Predicated region
        $region41: #{tpu_custom_call.1} parent=39 // pred_check
          %p283 = pneg %p59
        $region42: #{tpu_custom_call.1} parent=39 // pred_check_branch
          %285 = sbr.rel (%p283) target = $region44
        $region43: #{tpu_custom_call.1} parent=39 // pred_region
          %286 = dma.done %s279, 128
        $region44: #{tpu_custom_call.1} parent=39 // pred_fallthru
          _
        // Predicated region
        $region45: #{tpu_custom_call.1} parent=39 // pred_check
          %p287 = pneg %p80
        $region46: #{tpu_custom_call.1} parent=39 // pred_check_branch
          %289 = sbr.rel (%p287) target = $region48
        $region47: #{tpu_custom_call.1} parent=39 // pred_region
          %290 = dma.done [#allocation6], 256
        $region48: #{tpu_custom_call.1} parent=39 // pred_fallthru
          _
        // Predicated region
        $region49: #{tpu_custom_call.1} parent=39 // pred_check
          %p291 = pneg %p101
        $region50: #{tpu_custom_call.1} parent=39 // pred_check_branch
          %293 = sbr.rel (%p291) target = $region52
        $region51: #{tpu_custom_call.1} parent=39 // pred_region
          %294 = dma.done [#allocation6], 2048
        $region52: #{tpu_custom_call.1} parent=39 // pred_fallthru
          _
        %s295 = sand.u32 %s26, 1
        %s296 = scalar_lea.sflag [#allocation9], %s295
        %s297 = sand.u32 %s116, 1
        %s298 = smul.addr %s297, 2
        %s299 = scalar_lea.vmem [#allocation8], %s298
        // Predicated region
        $region53: #{tpu_custom_call.1} parent=39 // pred_check
          %p300 = pneg %p129
        $region54: #{tpu_custom_call.1} parent=39 // pred_check_branch
          %302 = sbr.rel (%p300) target = $region56
        $region55: #{tpu_custom_call.1} parent=39 // pred_region
          %303 = dma.done %s296, 32
        $region56: #{tpu_custom_call.1} parent=39 // pred_fallthru
          _
        // Predicated region
        $region57: #{tpu_custom_call.1} parent=39 // pred_check
          %p304 = pneg %p150
        $region58: #{tpu_custom_call.1} parent=39 // pred_check_branch
          %306 = sbr.rel (%p304) target = $region60
        $region59: #{tpu_custom_call.1} parent=39 // pred_region
          %307 = dma.done [#allocation9], 16
        $region60: #{tpu_custom_call.1} parent=39 // pred_fallthru
          _
        %s308 = sand.u32 %s46, 1
        %s309 = scalar_lea.sflag [#allocation3], %s308
        %s310 = sand.u32 %s46, 1
        %s311 = smul.addr %s310, 8
        %s312 = scalar_lea.vmem [#allocation2], %s311
        %p313 = pneg %p59
        %p314 = pneg %p56
        %p315 = pneg %p80
        %p316 = pneg %p77
        %p317 = pneg %p101
        %p318 = pneg %p98
        %s319 = sand.u32 %s26, 1
        %s320 = scalar_lea.sflag [#allocation9], %s319
        %s321 = sand.u32 %s116, 1
        %s322 = smul.addr %s321, 2
        %s323 = scalar_lea.vmem [#allocation8], %s322
        %p324 = pneg %p129
        %p325 = pneg %p126
        %p326 = pneg %p150
        %p327 = pneg %p147
        %p328 = pneg %p178
        %p329 = pneg %p175
        %s330 = sand.u32 %s165, 1
        %s331 = scalar_lea.sflag [#allocation4], %s330
        %s332 = sand.u32 %s165, 1
        %s333 = smul.addr %s332, 8
        %s334 = scalar_lea.vmem [#allocation11], %s333
        %v337 = vld [vmem:[#allocation5] sm:$0xff]
        %v338 = vld [vmem:[#allocation5 + $0x8] sm:$0xff]
        %v339 = vld [vmem:[#allocation7] sm:$0xff]
        %v340 = vld [vmem:[#allocation7 + $0x8] sm:$0xff]
        %v341 = vld [vmem:[#allocation7 + $0x10] sm:$0xff]
        %v342 = vld [vmem:[#allocation7 + $0x18] sm:$0xff]
        %v343 = vld [vmem:[#allocation7 + $0x20] sm:$0xff]
        %v344 = vld [vmem:[#allocation7 + $0x28] sm:$0xff]
        %v345 = vld [vmem:[#allocation7 + $0x30] sm:$0xff]
        %v346 = vld [vmem:[#allocation7 + $0x38] sm:$0xff]
        %v347 = vld [vmem:[#allocation7 + $0x40] sm:$0xff]
        %v348 = vld [vmem:[#allocation7 + $0x48] sm:$0xff]
        %v349 = vld [vmem:[#allocation7 + $0x50] sm:$0xff]
        %v350 = vld [vmem:[#allocation7 + $0x58] sm:$0xff]
        %v351 = vld [vmem:[#allocation7 + $0x60] sm:$0xff]
        %v352 = vld [vmem:[#allocation7 + $0x68] sm:$0xff]
        %v353 = vld [vmem:[#allocation7 + $0x70] sm:$0xff]
        %v354 = vld [vmem:[#allocation7 + $0x78] sm:$0xff]
        %v355 = vld [vmem:[%s299] sm:$0x3]
        %v356 = vld [vmem:[#allocation10] sm:$0x1]
        %v357 = vld [vmem:[%s282] sm:$0xff]
        %vm358 = vcmask 130048
        %v360 = vsel %vm358, %v357, 0
        %362 = vmatprep.subr.mxu0 0.0
        %363 = vmatpush1.msra.mxu0 %v337
        %364 = vmatprep.subr.mxu0 0.0
        %365 = vmatpush1.msra.mxu0 %v338
        %366 = vmatprep.subr.mxu0 0.0
        %367 = vmatpush1.msra.mxu0 0.0
        %368 = vmatprep.subr.mxu0 0.0
        %369 = vmatpush1.msra.mxu0 0.0
        %370 = vmatprep.subr.mxu0 0.0
        %371 = vmatpush1.msra.mxu0 0.0
        %372 = vmatprep.subr.mxu0 0.0
        %373 = vmatpush1.msra.mxu0 0.0
        %374 = vmatprep.subr.mxu0 0.0
        %375 = vmatpush1.msra.mxu0 0.0
        %376 = vmatprep.subr.mxu0 0.0
        %377 = vmatpush1.msra.mxu0 0.0
        %378 = vmatprep.subr.mxu0 0.0
        %379 = vmatpush1.msra.mxu0 0.0
        %380 = vmatprep.subr.mxu0 0.0
        %381 = vmatpush1.msra.mxu0 0.0
        %382 = vmatprep.subr.mxu0 0.0
        %383 = vmatpush1.msra.mxu0 0.0
        %384 = vmatprep.subr.mxu0 0.0
        %385 = vmatpush1.msra.mxu0 0.0
        %386 = vmatprep.subr.mxu0 0.0
        %387 = vmatpush1.msra.mxu0 0.0
        %388 = vmatprep.subr.mxu0 0.0
        %389 = vmatpush1.msra.mxu0 0.0
        %390 = vmatprep.subr.mxu0 0.0
        %391 = vmatpush1.msra.mxu0 0.0
        %392 = vmatprep.subr.mxu0 0.0
        %393 = vmatpush1.msra.mxu0 0.0
        %394 = vmatprep.subr.mxu0 0.0
        %395 = vmatpush1.msra.mxu0 0.0
        %396 = vmatprep.subr.mxu0 0.0
        %397 = vmatpush1.msra.mxu0 0.0
        %398 = vmatprep.subr.mxu0 0.0
        %399 = vmatpush1.msra.mxu0 0.0
        %400 = vmatprep.subr.mxu0 0.0
        %401 = vmatpush1.msra.mxu0 0.0
        %402 = vmatprep.subr.mxu0 0.0
        %403 = vmatpush1.msra.mxu0 0.0
        %404 = vmatprep.subr.mxu0 0.0
        %405 = vmatpush1.msra.mxu0 0.0
        %406 = vmatprep.subr.mxu0 0.0
        %407 = vmatpush1.msra.mxu0 0.0
        %408 = vmatprep.subr.mxu0 0.0
        %409 = vmatpush1.msra.mxu0 0.0
        %410 = vmatprep.subr.mxu0 0.0
        %411 = vmatpush1.msra.mxu0 0.0
        %412 = vmatprep.subr.mxu0 0.0
        %413 = vmatpush1.msra.mxu0 0.0
        %414 = vmatprep.subr.mxu0 0.0
        %415 = vmatpush1.msra.mxu0 0.0
        %416 = vmatprep.subr.mxu0 0.0
        %417 = vmatpush1.msra.mxu0 0.0
        %418 = vmatprep.subr.mxu0 0.0
        %419 = vmatpush1.msra.mxu0 0.0
        %420 = vmatprep.subr.mxu0 0.0
        %421 = vmatpush1.msra.mxu0 0.0
        %422 = vmatprep.subr.mxu0 0.0
        %423 = vmatpush1.msra.mxu0 0.0
        %424 = vmatprep.subr.mxu0 0.0
        %425 = vmatpush1.msra.mxu0 0.0
        %426 = vmatprep.mubr.f32.mxu0 0.0
        %427 = vmatmul.mubr.f32.gmra.mrb[0].mxu0 %v360
        %v428 = vpop.f32.mrb[0].mxu0
        %v429 = vadd.f32 0.0, %v428
        %v430 = vpop.f32.mrb[0].mxu0
        %431 = vdwg.mxu0
        %v432 = vtanh.pop %v429
        %433 = vmatprep.subr.mxu0 0.0
        %434 = vmatpush1.msra.mxu0 %v339
        %435 = vmatprep.subr.mxu0 0.0
        %436 = vmatpush1.msra.mxu0 %v340
        %437 = vmatprep.subr.mxu0 0.0
        %438 = vmatpush1.msra.mxu0 %v341
        %439 = vmatprep.subr.mxu0 0.0
        %440 = vmatpush1.msra.mxu0 %v342
        %441 = vmatprep.subr.mxu0 0.0
        %442 = vmatpush1.msra.mxu0 %v343
        %443 = vmatprep.subr.mxu0 0.0
        %444 = vmatpush1.msra.mxu0 %v344
        %445 = vmatprep.subr.mxu0 0.0
        %446 = vmatpush1.msra.mxu0 %v345
        %447 = vmatprep.subr.mxu0 0.0
        %448 = vmatpush1.msra.mxu0 %v346
        %449 = vmatprep.subr.mxu0 0.0
        %450 = vmatpush1.msra.mxu0 %v347
        %451 = vmatprep.subr.mxu0 0.0
        %452 = vmatpush1.msra.mxu0 %v348
        %453 = vmatprep.subr.mxu0 0.0
        %454 = vmatpush1.msra.mxu0 %v349
        %455 = vmatprep.subr.mxu0 0.0
        %456 = vmatpush1.msra.mxu0 %v350
        %457 = vmatprep.subr.mxu0 0.0
        %458 = vmatpush1.msra.mxu0 %v351
        %459 = vmatprep.subr.mxu0 0.0
        %460 = vmatpush1.msra.mxu0 %v352
        %461 = vmatprep.subr.mxu0 0.0
        %462 = vmatpush1.msra.mxu0 %v353
        %463 = vmatprep.subr.mxu0 0.0
        %464 = vmatpush1.msra.mxu0 %v354
        %465 = vmatprep.subr.mxu0 0.0
        %466 = vmatpush1.msra.mxu0 0.0
        %467 = vmatprep.subr.mxu0 0.0
        %468 = vmatpush1.msra.mxu0 0.0
        %469 = vmatprep.subr.mxu0 0.0
        %470 = vmatpush1.msra.mxu0 0.0
        %471 = vmatprep.subr.mxu0 0.0
        %472 = vmatpush1.msra.mxu0 0.0
        %473 = vmatprep.subr.mxu0 0.0
        %474 = vmatpush1.msra.mxu0 0.0
        %475 = vmatprep.subr.mxu0 0.0
        %476 = vmatpush1.msra.mxu0 0.0
        %477 = vmatprep.subr.mxu0 0.0
        %478 = vmatpush1.msra.mxu0 0.0
        %479 = vmatprep.subr.mxu0 0.0
        %480 = vmatpush1.msra.mxu0 0.0
        %481 = vmatprep.subr.mxu0 0.0
        %482 = vmatpush1.msra.mxu0 0.0
        %483 = vmatprep.subr.mxu0 0.0
        %484 = vmatpush1.msra.mxu0 0.0
        %485 = vmatprep.subr.mxu0 0.0
        %486 = vmatpush1.msra.mxu0 0.0
        %487 = vmatprep.subr.mxu0 0.0
        %488 = vmatpush1.msra.mxu0 0.0
        %489 = vmatprep.subr.mxu0 0.0
        %490 = vmatpush1.msra.mxu0 0.0
        %491 = vmatprep.subr.mxu0 0.0
        %492 = vmatpush1.msra.mxu0 0.0
        %493 = vmatprep.subr.mxu0 0.0
        %494 = vmatpush1.msra.mxu0 0.0
        %495 = vmatprep.subr.mxu0 0.0
        %496 = vmatpush1.msra.mxu0 0.0
        %497 = vmatprep.mubr.f32.mxu0 0.0
        %498 = vmatmul.mubr.f32.gmra.mrb[0].mxu0 %v432
        %v499 = vpop.f32.mrb[0].mxu0
        %v500 = vadd.f32 0.0, %v499
        %v501 = vpop.f32.mrb[0].mxu0
        %502 = vdwg.mxu0
        %vm503 = vnez %v355
        %505 = vrot.lane.b32.xlu0 %v500, 124
        %v506 = vpop.permute.xlu0 %505
        %508 = vxpose.xlu0.b32.start [1/16] %v506, 128
        %509 = vxpose.xlu0.b32.cont [2/16] 0.0, 128
        %510 = vxpose.xlu0.b32.cont [3/16] 0.0, 128
        %511 = vxpose.xlu0.b32.cont [4/16] 0.0, 128
        %512 = vxpose.xlu0.b32.cont [5/16] 0.0, 128
        %513 = vxpose.xlu0.b32.cont [6/16] 0.0, 128
        %514 = vxpose.xlu0.b32.cont [7/16] 0.0, 128
        %515 = vxpose.xlu0.b32.cont [8/16] 0.0, 128
        %516 = vxpose.xlu0.b32.cont [9/16] 0.0, 128
        %517 = vxpose.xlu0.b32.cont [10/16] 0.0, 128
        %518 = vxpose.xlu0.b32.cont [11/16] 0.0, 128
        %519 = vxpose.xlu0.b32.cont [12/16] 0.0, 128
        %520 = vxpose.xlu0.b32.cont [13/16] 0.0, 128
        %521 = vxpose.xlu0.b32.cont [14/16] 0.0, 128
        %522 = vxpose.xlu0.b32.cont [15/16] 0.0, 128
        %523 = vxpose.xlu0.b32.end [16/16] 0.0, 128
        %v524 = vpop.trf.xlu0
        %v525 = vpop.trf.xlu0
        %v526 = vpop.trf.xlu0
        %v527 = vpop.trf.xlu0
        %v528 = vpop.trf.xlu0
        %v529 = vpop.trf.xlu0
        %v530 = vpop.trf.xlu0
        %v531 = vpop.trf.xlu0
        %v532 = vpop.trf.xlu0
        %v533 = vpop.trf.xlu0
        %v534 = vpop.trf.xlu0
        %v535 = vpop.trf.xlu0
        %v536 = vpop.trf.xlu0
        %v537 = vpop.trf.xlu0
        %v538 = vpop.trf.xlu0
        %v539 = vpop.trf.xlu0
        %540 = vset.pattern.permute.xlu0 0
        %541 = vperm.xlu0 %540, %v500
        %v542 = vpop.permute.xlu0 %541
        %v544 = vlaneseq
        %v545 = vshrl.u32 %v544, 7
        %v546 = vsub.s32 0, %v545
        %v547 = vrot.slane %v524, %v546
        %v548 = vadd.f32 %v542, %v547
        %v549 = vmul.f32 %v548, 0.2
        %v550 = vmax.f32 %v548, %v549
        %v551 = vsel %vm503, 16843009, 0
        %v552 = vunpack.c.0.s8 %v551
        %vm553 = vcmp.ne.s32.totalorder %v552, 0
        %v554 = vsel %vm553, %v550, -1e+30
        %vm555 = vcmask 64512
        %v556 = vsel %vm555, %v554, -inf
        %557 = vmax.xlane.f32.xlu0 %v556
        %v558 = vpop.xlane.xlu0 %557
        %v559 = vsub.f32 %v554, %v558
        %v560 = vmul.f32 %v559, 1.442695
        %v561 = vpow.pop %v560
        %v562 = vsel %vm555, %v561, 0.0
        %563 = vadd.xlane.f32.xlu0 %v562
        %v564 = vpop.xlane.xlu0 %563
        %v566 = vsel %vm555, %v561, 0
        %568 = vmatprep.subr.mxu0 0.0
        %569 = vmatpush1.msra.mxu0 %v429
        %570 = vmatprep.subr.mxu0 0.0
        %571 = vmatpush1.msra.mxu0 0.0
        %572 = vmatprep.subr.mxu0 0.0
        %573 = vmatpush1.msra.mxu0 0.0
        %574 = vmatprep.subr.mxu0 0.0
        %575 = vmatpush1.msra.mxu0 0.0
        %576 = vmatprep.subr.mxu0 0.0
        %577 = vmatpush1.msra.mxu0 0.0
        %578 = vmatprep.subr.mxu0 0.0
        %579 = vmatpush1.msra.mxu0 0.0
        %580 = vmatprep.subr.mxu0 0.0
        %581 = vmatpush1.msra.mxu0 0.0
        %582 = vmatprep.subr.mxu0 0.0
        %583 = vmatpush1.msra.mxu0 0.0
        %584 = vmatprep.subr.mxu0 0.0
        %585 = vmatpush1.msra.mxu0 0.0
        %586 = vmatprep.subr.mxu0 0.0
        %587 = vmatpush1.msra.mxu0 0.0
        %588 = vmatprep.subr.mxu0 0.0
        %589 = vmatpush1.msra.mxu0 0.0
        %590 = vmatprep.subr.mxu0 0.0
        %591 = vmatpush1.msra.mxu0 0.0
        %592 = vmatprep.subr.mxu0 0.0
        %593 = vmatpush1.msra.mxu0 0.0
        %594 = vmatprep.subr.mxu0 0.0
        %595 = vmatpush1.msra.mxu0 0.0
        %596 = vmatprep.subr.mxu0 0.0
        %597 = vmatpush1.msra.mxu0 0.0
        %598 = vmatprep.subr.mxu0 0.0
        %599 = vmatpush1.msra.mxu0 0.0
        %600 = vmatprep.subr.mxu0 0.0
        %601 = vmatpush1.msra.mxu0 0.0
        %602 = vmatprep.subr.mxu0 0.0
        %603 = vmatpush1.msra.mxu0 0.0
        %604 = vmatprep.subr.mxu0 0.0
        %605 = vmatpush1.msra.mxu0 0.0
        %606 = vmatprep.subr.mxu0 0.0
        %607 = vmatpush1.msra.mxu0 0.0
        %608 = vmatprep.subr.mxu0 0.0
        %609 = vmatpush1.msra.mxu0 0.0
        %610 = vmatprep.subr.mxu0 0.0
        %611 = vmatpush1.msra.mxu0 0.0
        %612 = vmatprep.subr.mxu0 0.0
        %613 = vmatpush1.msra.mxu0 0.0
        %614 = vmatprep.subr.mxu0 0.0
        %615 = vmatpush1.msra.mxu0 0.0
        %616 = vmatprep.subr.mxu0 0.0
        %617 = vmatpush1.msra.mxu0 0.0
        %618 = vmatprep.subr.mxu0 0.0
        %619 = vmatpush1.msra.mxu0 0.0
        %620 = vmatprep.subr.mxu0 0.0
        %621 = vmatpush1.msra.mxu0 0.0
        %622 = vmatprep.subr.mxu0 0.0
        %623 = vmatpush1.msra.mxu0 0.0
        %624 = vmatprep.subr.mxu0 0.0
        %625 = vmatpush1.msra.mxu0 0.0
        %626 = vmatprep.subr.mxu0 0.0
        %627 = vmatpush1.msra.mxu0 0.0
        %628 = vmatprep.subr.mxu0 0.0
        %629 = vmatpush1.msra.mxu0 0.0
        %630 = vmatprep.subr.mxu0 0.0
        %631 = vmatpush1.msra.mxu0 0.0
        %632 = vmatprep.mubr.f32.mxu0 0.0
        %633 = vmatmul.mubr.f32.gmra.mrb[0].mxu0 %v566
        %v634 = vpop.f32.mrb[0].mxu0
        %v635 = vadd.f32 0.0, %v634
        %v636 = vpop.f32.mrb[0].mxu0
        %637 = vdwg.mxu0
        %v638 = vrcp.pop %v564
        %v639 = vmul.f32 %v635, %v638
        %640 = vrot.lane.b32.xlu0 %v500, 123
        %v641 = vpop.permute.xlu0 %640
        %643 = vxpose.xlu0.b32.start [1/16] %v641, 128
        %644 = vxpose.xlu0.b32.cont [2/16] 0.0, 128
        %645 = vxpose.xlu0.b32.cont [3/16] 0.0, 128
        %646 = vxpose.xlu0.b32.cont [4/16] 0.0, 128
        %647 = vxpose.xlu0.b32.cont [5/16] 0.0, 128
        %648 = vxpose.xlu0.b32.cont [6/16] 0.0, 128
        %649 = vxpose.xlu0.b32.cont [7/16] 0.0, 128
        %650 = vxpose.xlu0.b32.cont [8/16] 0.0, 128
        %651 = vxpose.xlu0.b32.cont [9/16] 0.0, 128
        %652 = vxpose.xlu0.b32.cont [10/16] 0.0, 128
        %653 = vxpose.xlu0.b32.cont [11/16] 0.0, 128
        %654 = vxpose.xlu0.b32.cont [12/16] 0.0, 128
        %655 = vxpose.xlu0.b32.cont [13/16] 0.0, 128
        %656 = vxpose.xlu0.b32.cont [14/16] 0.0, 128
        %657 = vxpose.xlu0.b32.cont [15/16] 0.0, 128
        %658 = vxpose.xlu0.b32.end [16/16] 0.0, 128
        %v659 = vpop.trf.xlu0
        %v660 = vpop.trf.xlu0
        %v661 = vpop.trf.xlu0
        %v662 = vpop.trf.xlu0
        %v663 = vpop.trf.xlu0
        %v664 = vpop.trf.xlu0
        %v665 = vpop.trf.xlu0
        %v666 = vpop.trf.xlu0
        %v667 = vpop.trf.xlu0
        %v668 = vpop.trf.xlu0
        %v669 = vpop.trf.xlu0
        %v670 = vpop.trf.xlu0
        %v671 = vpop.trf.xlu0
        %v672 = vpop.trf.xlu0
        %v673 = vpop.trf.xlu0
        %v674 = vpop.trf.xlu0
        %675 = vset.pattern.permute.xlu0 1
        %676 = vperm.xlu0 %675, %v500
        %v677 = vpop.permute.xlu0 %676
        %v679 = vlaneseq
        %v680 = vshrl.u32 %v679, 7
        %v681 = vsub.s32 0, %v680
        %v682 = vrot.slane %v659, %v681
        %v683 = vadd.f32 %v677, %v682
        %v684 = vmul.f32 %v683, 0.2
        %v685 = vmax.f32 %v683, %v684
        %v686 = vsel %vm553, %v685, -1e+30
        %v687 = vsel %vm555, %v686, -inf
        %688 = vmax.xlane.f32.xlu0 %v687
        %v689 = vpop.xlane.xlu0 %688
        %v690 = vsub.f32 %v686, %v689
        %v691 = vmul.f32 %v690, 1.442695
        %v692 = vpow.pop %v691
        %v693 = vsel %vm555, %v692, 0.0
        %694 = vadd.xlane.f32.xlu0 %v693
        %v695 = vpop.xlane.xlu0 %694
        %697 = vrot.lane.b32.xlu0 %v429, 96
        %v698 = vpop.permute.xlu0 %697
        %v701 = vsel %vm555, %v692, 0
        %703 = vmatprep.subr.mxu0 0.0
        %704 = vmatpush1.msra.mxu0 %v698
        %705 = vmatprep.subr.mxu0 0.0
        %706 = vmatpush1.msra.mxu0 0.0
        %707 = vmatprep.subr.mxu0 0.0
        %708 = vmatpush1.msra.mxu0 0.0
        %709 = vmatprep.subr.mxu0 0.0
        %710 = vmatpush1.msra.mxu0 0.0
        %711 = vmatprep.subr.mxu0 0.0
        %712 = vmatpush1.msra.mxu0 0.0
        %713 = vmatprep.subr.mxu0 0.0
        %714 = vmatpush1.msra.mxu0 0.0
        %715 = vmatprep.subr.mxu0 0.0
        %716 = vmatpush1.msra.mxu0 0.0
        %717 = vmatprep.subr.mxu0 0.0
        %718 = vmatpush1.msra.mxu0 0.0
        %719 = vmatprep.subr.mxu0 0.0
        %720 = vmatpush1.msra.mxu0 0.0
        %721 = vmatprep.subr.mxu0 0.0
        %722 = vmatpush1.msra.mxu0 0.0
        %723 = vmatprep.subr.mxu0 0.0
        %724 = vmatpush1.msra.mxu0 0.0
        %725 = vmatprep.subr.mxu0 0.0
        %726 = vmatpush1.msra.mxu0 0.0
        %727 = vmatprep.subr.mxu0 0.0
        %728 = vmatpush1.msra.mxu0 0.0
        %729 = vmatprep.subr.mxu0 0.0
        %730 = vmatpush1.msra.mxu0 0.0
        %731 = vmatprep.subr.mxu0 0.0
        %732 = vmatpush1.msra.mxu0 0.0
        %733 = vmatprep.subr.mxu0 0.0
        %734 = vmatpush1.msra.mxu0 0.0
        %735 = vmatprep.subr.mxu0 0.0
        %736 = vmatpush1.msra.mxu0 0.0
        %737 = vmatprep.subr.mxu0 0.0
        %738 = vmatpush1.msra.mxu0 0.0
        %739 = vmatprep.subr.mxu0 0.0
        %740 = vmatpush1.msra.mxu0 0.0
        %741 = vmatprep.subr.mxu0 0.0
        %742 = vmatpush1.msra.mxu0 0.0
        %743 = vmatprep.subr.mxu0 0.0
        %744 = vmatpush1.msra.mxu0 0.0
        %745 = vmatprep.subr.mxu0 0.0
        %746 = vmatpush1.msra.mxu0 0.0
        %747 = vmatprep.subr.mxu0 0.0
        %748 = vmatpush1.msra.mxu0 0.0
        %749 = vmatprep.subr.mxu0 0.0
        %750 = vmatpush1.msra.mxu0 0.0
        %751 = vmatprep.subr.mxu0 0.0
        %752 = vmatpush1.msra.mxu0 0.0
        %753 = vmatprep.subr.mxu0 0.0
        %754 = vmatpush1.msra.mxu0 0.0
        %755 = vmatprep.subr.mxu0 0.0
        %756 = vmatpush1.msra.mxu0 0.0
        %757 = vmatprep.subr.mxu0 0.0
        %758 = vmatpush1.msra.mxu0 0.0
        %759 = vmatprep.subr.mxu0 0.0
        %760 = vmatpush1.msra.mxu0 0.0
        %761 = vmatprep.subr.mxu0 0.0
        %762 = vmatpush1.msra.mxu0 0.0
        %763 = vmatprep.subr.mxu0 0.0
        %764 = vmatpush1.msra.mxu0 0.0
        %765 = vmatprep.subr.mxu0 0.0
        %766 = vmatpush1.msra.mxu0 0.0
        %767 = vmatprep.mubr.f32.mxu0 0.0
        %768 = vmatmul.mubr.f32.gmra.mrb[0].mxu0 %v701
        %v769 = vpop.f32.mrb[0].mxu0
        %v770 = vadd.f32 0.0, %v769
        %v771 = vpop.f32.mrb[0].mxu0
        %772 = vdwg.mxu0
        %v773 = vrcp.pop %v695
        %v774 = vmul.f32 %v770, %v773
        %775 = vrot.lane.b32.xlu0 %v500, 122
        %v776 = vpop.permute.xlu0 %775
        %778 = vxpose.xlu0.b32.start [1/16] %v776, 128
        %779 = vxpose.xlu0.b32.cont [2/16] 0.0, 128
        %780 = vxpose.xlu0.b32.cont [3/16] 0.0, 128
        %781 = vxpose.xlu0.b32.cont [4/16] 0.0, 128
        %782 = vxpose.xlu0.b32.cont [5/16] 0.0, 128
        %783 = vxpose.xlu0.b32.cont [6/16] 0.0, 128
        %784 = vxpose.xlu0.b32.cont [7/16] 0.0, 128
        %785 = vxpose.xlu0.b32.cont [8/16] 0.0, 128
        %786 = vxpose.xlu0.b32.cont [9/16] 0.0, 128
        %787 = vxpose.xlu0.b32.cont [10/16] 0.0, 128
        %788 = vxpose.xlu0.b32.cont [11/16] 0.0, 128
        %789 = vxpose.xlu0.b32.cont [12/16] 0.0, 128
        %790 = vxpose.xlu0.b32.cont [13/16] 0.0, 128
        %791 = vxpose.xlu0.b32.cont [14/16] 0.0, 128
        %792 = vxpose.xlu0.b32.cont [15/16] 0.0, 128
        %793 = vxpose.xlu0.b32.end [16/16] 0.0, 128
        %v794 = vpop.trf.xlu0
        %v795 = vpop.trf.xlu0
        %v796 = vpop.trf.xlu0
        %v797 = vpop.trf.xlu0
        %v798 = vpop.trf.xlu0
        %v799 = vpop.trf.xlu0
        %v800 = vpop.trf.xlu0
        %v801 = vpop.trf.xlu0
        %v802 = vpop.trf.xlu0
        %v803 = vpop.trf.xlu0
        %v804 = vpop.trf.xlu0
        %v805 = vpop.trf.xlu0
        %v806 = vpop.trf.xlu0
        %v807 = vpop.trf.xlu0
        %v808 = vpop.trf.xlu0
        %v809 = vpop.trf.xlu0
        %810 = vset.pattern.permute.xlu0 2
        %811 = vperm.xlu0 %810, %v500
        %v812 = vpop.permute.xlu0 %811
        %v814 = vlaneseq
        %v815 = vshrl.u32 %v814, 7
        %v816 = vsub.s32 0, %v815
        %v817 = vrot.slane %v794, %v816
        %v818 = vadd.f32 %v812, %v817
        %v819 = vmul.f32 %v818, 0.2
        %v820 = vmax.f32 %v818, %v819
        %v821 = vsel %vm553, %v820, -1e+30
        %v822 = vsel %vm555, %v821, -inf
        %823 = vmax.xlane.f32.xlu0 %v822
        %v824 = vpop.xlane.xlu0 %823
        %v825 = vsub.f32 %v821, %v824
        %v826 = vmul.f32 %v825, 1.442695
        %v827 = vpow.pop %v826
        %v828 = vsel %vm555, %v827, 0.0
        %829 = vadd.xlane.f32.xlu0 %v828
        %v830 = vpop.xlane.xlu0 %829
        %831 = vrot.lane.b32.xlu0 %v429, 64
        %v832 = vpop.permute.xlu0 %831
        %v835 = vsel %vm555, %v827, 0
        %837 = vmatprep.subr.mxu0 0.0
        %838 = vmatpush1.msra.mxu0 %v832
        %839 = vmatprep.subr.mxu0 0.0
        %840 = vmatpush1.msra.mxu0 0.0
        %841 = vmatprep.subr.mxu0 0.0
        %842 = vmatpush1.msra.mxu0 0.0
        %843 = vmatprep.subr.mxu0 0.0
        %844 = vmatpush1.msra.mxu0 0.0
        %845 = vmatprep.subr.mxu0 0.0
        %846 = vmatpush1.msra.mxu0 0.0
        %847 = vmatprep.subr.mxu0 0.0
        %848 = vmatpush1.msra.mxu0 0.0
        %849 = vmatprep.subr.mxu0 0.0
        %850 = vmatpush1.msra.mxu0 0.0
        %851 = vmatprep.subr.mxu0 0.0
        %852 = vmatpush1.msra.mxu0 0.0
        %853 = vmatprep.subr.mxu0 0.0
        %854 = vmatpush1.msra.mxu0 0.0
        %855 = vmatprep.subr.mxu0 0.0
        %856 = vmatpush1.msra.mxu0 0.0
        %857 = vmatprep.subr.mxu0 0.0
        %858 = vmatpush1.msra.mxu0 0.0
        %859 = vmatprep.subr.mxu0 0.0
        %860 = vmatpush1.msra.mxu0 0.0
        %861 = vmatprep.subr.mxu0 0.0
        %862 = vmatpush1.msra.mxu0 0.0
        %863 = vmatprep.subr.mxu0 0.0
        %864 = vmatpush1.msra.mxu0 0.0
        %865 = vmatprep.subr.mxu0 0.0
        %866 = vmatpush1.msra.mxu0 0.0
        %867 = vmatprep.subr.mxu0 0.0
        %868 = vmatpush1.msra.mxu0 0.0
        %869 = vmatprep.subr.mxu0 0.0
        %870 = vmatpush1.msra.mxu0 0.0
        %871 = vmatprep.subr.mxu0 0.0
        %872 = vmatpush1.msra.mxu0 0.0
        %873 = vmatprep.subr.mxu0 0.0
        %874 = vmatpush1.msra.mxu0 0.0
        %875 = vmatprep.subr.mxu0 0.0
        %876 = vmatpush1.msra.mxu0 0.0
        %877 = vmatprep.subr.mxu0 0.0
        %878 = vmatpush1.msra.mxu0 0.0
        %879 = vmatprep.subr.mxu0 0.0
        %880 = vmatpush1.msra.mxu0 0.0
        %881 = vmatprep.subr.mxu0 0.0
        %882 = vmatpush1.msra.mxu0 0.0
        %883 = vmatprep.subr.mxu0 0.0
        %884 = vmatpush1.msra.mxu0 0.0
        %885 = vmatprep.subr.mxu0 0.0
        %886 = vmatpush1.msra.mxu0 0.0
        %887 = vmatprep.subr.mxu0 0.0
        %888 = vmatpush1.msra.mxu0 0.0
        %889 = vmatprep.subr.mxu0 0.0
        %890 = vmatpush1.msra.mxu0 0.0
        %891 = vmatprep.subr.mxu0 0.0
        %892 = vmatpush1.msra.mxu0 0.0
        %893 = vmatprep.subr.mxu0 0.0
        %894 = vmatpush1.msra.mxu0 0.0
        %895 = vmatprep.subr.mxu0 0.0
        %896 = vmatpush1.msra.mxu0 0.0
        %897 = vmatprep.subr.mxu0 0.0
        %898 = vmatpush1.msra.mxu0 0.0
        %899 = vmatprep.subr.mxu0 0.0
        %900 = vmatpush1.msra.mxu0 0.0
        %901 = vmatprep.mubr.f32.mxu0 0.0
        %902 = vmatmul.mubr.f32.gmra.mrb[0].mxu0 %v835
        %v903 = vpop.f32.mrb[0].mxu0
        %v904 = vadd.f32 0.0, %v903
        %v905 = vpop.f32.mrb[0].mxu0
        %906 = vdwg.mxu0
        %v907 = vrcp.pop %v830
        %v908 = vmul.f32 %v904, %v907
        %909 = vrot.lane.b32.xlu0 %v500, 121
        %v910 = vpop.permute.xlu0 %909
        %912 = vxpose.xlu0.b32.start [1/16] %v910, 128
        %913 = vxpose.xlu0.b32.cont [2/16] 0.0, 128
        %914 = vxpose.xlu0.b32.cont [3/16] 0.0, 128
        %915 = vxpose.xlu0.b32.cont [4/16] 0.0, 128
        %916 = vxpose.xlu0.b32.cont [5/16] 0.0, 128
        %917 = vxpose.xlu0.b32.cont [6/16] 0.0, 128
        %918 = vxpose.xlu0.b32.cont [7/16] 0.0, 128
        %919 = vxpose.xlu0.b32.cont [8/16] 0.0, 128
        %920 = vxpose.xlu0.b32.cont [9/16] 0.0, 128
        %921 = vxpose.xlu0.b32.cont [10/16] 0.0, 128
        %922 = vxpose.xlu0.b32.cont [11/16] 0.0, 128
        %923 = vxpose.xlu0.b32.cont [12/16] 0.0, 128
        %924 = vxpose.xlu0.b32.cont [13/16] 0.0, 128
        %925 = vxpose.xlu0.b32.cont [14/16] 0.0, 128
        %926 = vxpose.xlu0.b32.cont [15/16] 0.0, 128
        %927 = vxpose.xlu0.b32.end [16/16] 0.0, 128
        %v928 = vpop.trf.xlu0
        %v929 = vpop.trf.xlu0
        %v930 = vpop.trf.xlu0
        %v931 = vpop.trf.xlu0
        %v932 = vpop.trf.xlu0
        %v933 = vpop.trf.xlu0
        %v934 = vpop.trf.xlu0
        %v935 = vpop.trf.xlu0
        %v936 = vpop.trf.xlu0
        %v937 = vpop.trf.xlu0
        %v938 = vpop.trf.xlu0
        %v939 = vpop.trf.xlu0
        %v940 = vpop.trf.xlu0
        %v941 = vpop.trf.xlu0
        %v942 = vpop.trf.xlu0
        %v943 = vpop.trf.xlu0
        %944 = vset.pattern.permute.xlu0 3
        %945 = vperm.xlu0 %944, %v500
        %v946 = vpop.permute.xlu0 %945
        %v948 = vlaneseq
        %v949 = vshrl.u32 %v948, 7
        %v950 = vsub.s32 0, %v949
        %v951 = vrot.slane %v928, %v950
        %v952 = vadd.f32 %v946, %v951
        %v953 = vmul.f32 %v952, 0.2
        %v954 = vmax.f32 %v952, %v953
        %v955 = vsel %vm553, %v954, -1e+30
        %v956 = vsel %vm555, %v955, -inf
        %957 = vmax.xlane.f32.xlu0 %v956
        %v958 = vpop.xlane.xlu0 %957
        %v959 = vsub.f32 %v955, %v958
        %v960 = vmul.f32 %v959, 1.442695
        %v961 = vpow.pop %v960
        %v962 = vsel %vm555, %v961, 0.0
        %963 = vadd.xlane.f32.xlu0 %v962
        %v964 = vpop.xlane.xlu0 %963
        %965 = vrot.lane.b32.xlu0 %v429, 32
        %v966 = vpop.permute.xlu0 %965
        %v969 = vsel %vm555, %v961, 0
        %971 = vmatprep.subr.mxu0 0.0
        %972 = vmatpush1.msra.mxu0 %v966
        %973 = vmatprep.subr.mxu0 0.0
        %974 = vmatpush1.msra.mxu0 0.0
        %975 = vmatprep.subr.mxu0 0.0
        %976 = vmatpush1.msra.mxu0 0.0
        %977 = vmatprep.subr.mxu0 0.0
        %978 = vmatpush1.msra.mxu0 0.0
        %979 = vmatprep.subr.mxu0 0.0
        %980 = vmatpush1.msra.mxu0 0.0
        %981 = vmatprep.subr.mxu0 0.0
        %982 = vmatpush1.msra.mxu0 0.0
        %983 = vmatprep.subr.mxu0 0.0
        %984 = vmatpush1.msra.mxu0 0.0
        %985 = vmatprep.subr.mxu0 0.0
        %986 = vmatpush1.msra.mxu0 0.0
        %987 = vmatprep.subr.mxu0 0.0
        %988 = vmatpush1.msra.mxu0 0.0
        %989 = vmatprep.subr.mxu0 0.0
        %990 = vmatpush1.msra.mxu0 0.0
        %991 = vmatprep.subr.mxu0 0.0
        %992 = vmatpush1.msra.mxu0 0.0
        %993 = vmatprep.subr.mxu0 0.0
        %994 = vmatpush1.msra.mxu0 0.0
        %995 = vmatprep.subr.mxu0 0.0
        %996 = vmatpush1.msra.mxu0 0.0
        %997 = vmatprep.subr.mxu0 0.0
        %998 = vmatpush1.msra.mxu0 0.0
        %999 = vmatprep.subr.mxu0 0.0
        %1000 = vmatpush1.msra.mxu0 0.0
        %1001 = vmatprep.subr.mxu0 0.0
        %1002 = vmatpush1.msra.mxu0 0.0
        %1003 = vmatprep.subr.mxu0 0.0
        %1004 = vmatpush1.msra.mxu0 0.0
        %1005 = vmatprep.subr.mxu0 0.0
        %1006 = vmatpush1.msra.mxu0 0.0
        %1007 = vmatprep.subr.mxu0 0.0
        %1008 = vmatpush1.msra.mxu0 0.0
        %1009 = vmatprep.subr.mxu0 0.0
        %1010 = vmatpush1.msra.mxu0 0.0
        %1011 = vmatprep.subr.mxu0 0.0
        %1012 = vmatpush1.msra.mxu0 0.0
        %1013 = vmatprep.subr.mxu0 0.0
        %1014 = vmatpush1.msra.mxu0 0.0
        %1015 = vmatprep.subr.mxu0 0.0
        %1016 = vmatpush1.msra.mxu0 0.0
        %1017 = vmatprep.subr.mxu0 0.0
        %1018 = vmatpush1.msra.mxu0 0.0
        %1019 = vmatprep.subr.mxu0 0.0
        %1020 = vmatpush1.msra.mxu0 0.0
        %1021 = vmatprep.subr.mxu0 0.0
        %1022 = vmatpush1.msra.mxu0 0.0
        %1023 = vmatprep.subr.mxu0 0.0
        %1024 = vmatpush1.msra.mxu0 0.0
        %1025 = vmatprep.subr.mxu0 0.0
        %1026 = vmatpush1.msra.mxu0 0.0
        %1027 = vmatprep.subr.mxu0 0.0
        %1028 = vmatpush1.msra.mxu0 0.0
        %1029 = vmatprep.subr.mxu0 0.0
        %1030 = vmatpush1.msra.mxu0 0.0
        %1031 = vmatprep.subr.mxu0 0.0
        %1032 = vmatpush1.msra.mxu0 0.0
        %1033 = vmatprep.subr.mxu0 0.0
        %1034 = vmatpush1.msra.mxu0 0.0
        %1035 = vmatprep.mubr.f32.mxu0 0.0
        %1036 = vmatmul.mubr.f32.gmra.mrb[0].mxu0 %v969
        %v1037 = vpop.f32.mrb[0].mxu0
        %v1038 = vadd.f32 0.0, %v1037
        %v1039 = vpop.f32.mrb[0].mxu0
        %1040 = vdwg.mxu0
        %v1041 = vrcp.pop %v964
        %v1042 = vmul.f32 %v1038, %v1041
        %1044 = vrot.lane.b32.xlu0 %v774, 32
        %v1045 = vpop.permute.xlu0 %1044
        %1048 = vrot.lane.b32.xlu0 %v908, 64
        %v1049 = vpop.permute.xlu0 %1048
        %1052 = vrot.lane.b32.xlu0 %v1042, 96
        %v1053 = vpop.permute.xlu0 %1052
        %vm1055 = vcmask 261120
        %v1056 = vsel %vm1055, %v639, %v1045
        %vm1057 = vcmask 523264
        %v1058 = vsel %vm1057, %v1056, %v1049
        %vm1059 = vcmask 785408
        %v1060 = vsel %vm1059, %v1058, %v1053
        %v1062 = vlaneseq
        %v1063 = vshrl.u32 %v1062, 7
        %v1064 = vsub.s32 0, %v1063
        %v1065 = vrot.slane %v356, %v1064
        %v1067 = vadd.f32 %v1060, %v1065
        %1068 = vst [vmem:[%s334] sm:$0xff] %v1067
        %s1069 = sand.u32 %s165, 1
        %s1070 = scalar_lea.sflag [#allocation4], %s1069
        %s1071 = sand.u32 %s165, 1
        %s1072 = smul.addr %s1071, 8
        %s1073 = scalar_lea.vmem [#allocation11], %s1072
        // Predicated region
        $region61: #{tpu_custom_call.1} parent=39 // pred_check
          %p1074 = pneg %p175
        $region62: #{tpu_custom_call.1} parent=39 // pred_check_branch
          %1076 = sbr.rel (%p1074) target = $region64
        $region63: #{tpu_custom_call.1} parent=39 // pred_region
          %s1078 = ssub.s32 128, 128
          %1079 = vsyncadd %s1070, %s1078
          %s1080 = sadd.s32 %s31, %s30
          %s1081 = smul.addr %s1080, 128
          %s1082 = scalar_lea.hbm %s5, %s1081
          %s1084 = sshll.u32 %s1073, 4
          %s1085 = int_to_ptr.vmem [resolvable:$true] %s1084
          %1087 = dma.vmem_to_hbm [thread:$0]  %s1085, 128, %s1082, %s1070
        $region64: #{tpu_custom_call.1} parent=39 // pred_fallthru
          _
      $region40: #{tpu_custom_call.1} parent=5 // pred_fallthru
        _
      %p1088 = scmp.le.s32.totalorder 2, %s21
      // Predicated region
      $region65: #{tpu_custom_call.1} parent=5 // pred_check
        %p1089 = pneg %p1088
      $region66: #{tpu_custom_call.1} parent=5 // pred_check_branch
        %1091 = sbr.rel (%p1089) target = $region68
      $region67: #{tpu_custom_call.1} parent=5 // pred_region
        %s1092 = ssub.s32 %s21, 2
        // Predicated region
        $region69: #{tpu_custom_call.1} parent=67 // pred_check
          %p1093 = pneg %p181
        $region70: #{tpu_custom_call.1} parent=67 // pred_check_branch
          %1095 = sbr.rel (%p1093) target = $region72
        $region71: #{tpu_custom_call.1} parent=67 // pred_region
          %s1096 = sand.u32 %s166, 1
          %s1097 = scalar_lea.sflag [#allocation4], %s1096
          %s1098 = sand.u32 %s166, 1
          %s1099 = smul.addr %s1098, 8
          %s1100 = scalar_lea.vmem [#allocation11], %s1099
          %1101 = dma.done %s1097, 128
        $region72: #{tpu_custom_call.1} parent=67 // pred_fallthru
          _
      $region68: #{tpu_custom_call.1} parent=5 // pred_fallthru
        _
    $region6: #{tpu_custom_call.1} parent=1 // loop_footer
      %s25 = sadd.s32 1, %s21
    $region7: #{tpu_custom_call.1} parent=1 // loop_footer_branch
      %20 = sbr.rel target = $region3
    $region8: #{tpu_custom_call.1} parent=1 // loop_exit
      _
    %1102 = vsyncpa [#allocation3], 1
    %s1103 = scalar_lea.sflag [#allocation3], 1
    %1104 = vsyncpa %s1103, 1
    %1105 = vsyncpa [#allocation6], 1
    %1106 = vsyncpa [#allocation9], 1
    %s1107 = scalar_lea.sflag [#allocation9], 1
    %1108 = vsyncpa %s1107, 1
    %1109 = vsyncpa [#allocation4], 1
    %s1110 = scalar_lea.sflag [#allocation4], 1
    %1111 = vsyncpa %s1110, 1

</llo_original>
